<compile_context>
chip_gen: v7x
topology: tpu7x:2x2x1
jax: 0.10.0
libtpu: 0.0.40
codegen_flags: <defaults>
</compile_context>

<pallas_src>
import functools

import jax
import jax.numpy as jnp
from jax import lax
from jax.experimental import pallas as pl
from jax.experimental.pallas import tpu as pltpu

_LANES = 128


# ---------------------------------------------------------------------------
# Host-side sizing helpers (static, trace-time decisions only)
# ---------------------------------------------------------------------------
def _round_up(n: int, m: int) -> int:
    return ((n + m - 1) // m) * m


@functools.lru_cache(maxsize=1)
def _vmem_capacity_bytes() -> int:
    """Physical VMEM per TensorCore (v5e/v6e: 128 MiB, v7x: 64 MiB)."""
    try:
        cap = int(getattr(pltpu.get_tpu_info(), "vmem_capacity_bytes", 0))
        if cap > 0:
            return cap
    except Exception:  # host-side config query only; never in the hot path
        pass
    return 64 * 1024 * 1024  # conservative default (v7x per-TC VMEM)


def _tile_budget_bytes() -> int:
    """VMEM the auto-tiler may spend on (double-buffered) tiles."""
    return min(_vmem_capacity_bytes() // 3, 32 * 1024 * 1024)


def _vmem_limit_bytes(estimate_bytes: int):
    """Raise the scoped-VMEM limit only when a config actually needs it."""
    needed = int(estimate_bytes * 1.4) + (2 << 20)
    if needed <= 12 * 1024 * 1024:
        return None  # stay at the per-generation default scoped limit
    # Cap well below physical VMEM (v7x has only 64 MiB per TensorCore).
    return min(needed, (3 * _vmem_capacity_bytes()) // 4)


def _pick_block_n(n: int, per_row_vmem_bytes: int, target_rows: int,
                  budget_bytes: int) -> int:
    """Largest lane-aligned block that fits the VMEM budget, big enough to
    amortize the ~0.35 us per-grid-step overhead, and small enough that the
    ("parallel",) grid has >= 2 blocks so both v7x TensorCores get work."""
    bn = min(int(target_rows),
             budget_bytes // max(per_row_vmem_bytes, 1),
             8192,
             _round_up(max(n, 1), _LANES))
    if n > 2 * _LANES:
        bn = min(bn, _round_up(-(-n // 2), _LANES))  # keep >= 2 grid blocks
    return max(_LANES, (bn // _LANES) * _LANES)


def _fused_d_pad(d: int) -> int:
    # power of two >= 8: sublane-aligned slices and a clean product tree
    return max(8, int(pl.next_power_of_2(d)))


# ---------------------------------------------------------------------------
# Kernels
# ---------------------------------------------------------------------------
def _prod_over_sublanes(x):
    """Product over axis 0 of a (d, block_n) tile (d a power of two) as a
    log2(d) tree of full-lane-width VPU multiplies: no cross-lane XLU reduce,
    no relayout; the result is a lane-dense (1, block_n) row."""
    d = x.shape[0]
    while d > 1:
        half = d // 2
        x = x[:half] * x[half:d]
        d = half
    return x


def _nf1_fused_kernel(xT_ref, tables_ref, out_ref, *, d_pad):
    """Transposed-layout NF1 with the row gather fused as a one-hot MXU matmul.

    xT_ref:     (2, block_n) int32        -- row 0: idx_A, row 1: idx_B
    tables_ref: (6*d_pad, vocab) float32  -- [min^T ; max^T] x 3 bf16-exact parts
    out_ref:    (1, 1, block_n) float32   -- lane-dense predictions
    """
    two_d = 2 * d_pad
    idx_a = xT_ref[0:1, :]                      # (1, bn) lane-major indices
    idx_b = xT_ref[1:2, :]
    tables = tables_ref[...]                    # VMEM-resident across the grid
    vocab = tables.shape[1]
    bn = idx_a.shape[1]

    # One-hot gather on the (otherwise idle) MXU: each one-hot column selects
    # exactly one table column, so the matmul reproduces the gathered rows --
    # already in the transposed (d_pad, block_n) layout the rest of the kernel
    # wants (dims on sublanes, rows on lanes).
    row_ids = lax.broadcasted_iota(jnp.int32, (vocab, bn), 0)
    onehot_a = (row_ids == idx_a).astype(jnp.float32)        # (vocab, bn)
    onehot_b = (row_ids == idx_b).astype(jnp.float32)
    g_a = jnp.dot(tables, onehot_a, preferred_element_type=jnp.float32)
    g_b = jnp.dot(tables, onehot_b, preferred_element_type=jnp.float32)
    # Recombine the three bf16-exact split components -> exact f32 rows.
    box_a = g_a[:two_d] + g_a[two_d:2 * two_d] + g_a[2 * two_d:]
    box_b = g_b[:two_d] + g_b[two_d:2 * two_d] + g_b[2 * two_d:]
    min_a, max_a = box_a[:d_pad], box_a[d_pad:]
    min_b, max_b = box_b[:d_pad], box_b[d_pad:]

    inter_min = jnp.maximum(min_a, min_b)
    inter_max = jnp.minimum(max_a, max_b)
    vol_ab = _prod_over_sublanes(inter_max - inter_min)      # (1, bn)
    vol_a = _prod_over_sublanes(max_a - min_a)               # (1, bn)
    pred = vol_ab / vol_a                                    # exact divide
    out_ref[...] = pred.reshape(out_ref.shape).astype(out_ref.dtype)


def _nf1_stream_kernel(min_a_ref, max_a_ref, min_b_ref, max_b_ref, out_ref):
    """Streaming NF1 over pre-gathered (block_n, D) boxes (big-vocab fallback)."""
    min_a = min_a_ref[...]
    max_a = max_a_ref[...]
    inter_min = jnp.maximum(min_a, min_b_ref[...])
    inter_max = jnp.minimum(max_a, max_b_ref[...])
    # D == full embedding dim here; this path reads 16*D B/row from HBM so the
    # sparse (block_n, 1) epilogue/store is noise next to the input traffic --
    # the lane-dense layout lives on the default fused path above.
    vol_ab = jnp.prod(inter_max - inter_min, axis=1, keepdims=True)
    vol_a = jnp.prod(max_a - min_a, axis=1, keepdims=True)
    out_ref[...] = (vol_ab / vol_a).astype(out_ref.dtype)


# ---------------------------------------------------------------------------
# pallas_call wrappers
# ---------------------------------------------------------------------------
def _build_fused_tables(min_emb, max_emb, d_pad):
    """(6*d_pad, vocab) transposed, stacked, bf16-exact-split table.

    Rows [0, d_pad) = min^T, [d_pad, 2*d_pad) = max^T; padded embedding dims use
    (min=0, max=1) so they contribute a factor of exactly 1 to every volume.
    Each f32 entry is split into three bf16-representable components
    (p1 + p2 + p3 == value) so the in-kernel one-hot MXU gather is exact no
    matter how the MXU emulates f32 matmuls.
    """
    vocab, d = min_emb.shape
    min_t = jnp.pad(min_emb.astype(jnp.float32).T, ((0, d_pad - d), (0, 0)),
                    constant_values=0.0)
    max_t = jnp.pad(max_emb.astype(jnp.float32).T, ((0, d_pad - d), (0, 0)),
                    constant_values=1.0)
    stacked = jnp.concatenate([min_t, max_t], axis=0)        # (2*d_pad, vocab)
    p1 = stacked.astype(jnp.bfloat16).astype(jnp.float32)
    r1 = stacked - p1
    p2 = r1.astype(jnp.bfloat16).astype(jnp.float32)
    p3 = r1 - p2
    return jnp.concatenate([p1, p2, p3], axis=0)             # (6*d_pad, vocab)


def nf1_pred_fused_pallas(min_emb, max_emb, x, *, block_n=None):
    """NF1 with the gather fused in-kernel (one-hot MXU gather, transposed tiles).

    Reads only 8 B/row of index data from HBM (plus the small resident tables)
    vs. the streaming path's 16*D B/row of gathered boxes.  Returns (N, 1) f32.
    """
    vocab, d = min_emb.shape
    n = x.shape[0]
    d_pad = _fused_d_pad(d)
    tables = _build_fused_tables(min_emb, max_emb, d_pad)    # (6*d_pad, vocab)
    xT = x.astype(jnp.int32).T                               # (2, N), lane-major

    table_bytes = 6 * d_pad * vocab * 4
    # per-row VMEM: xT + out blocks (double-buffered) + one-hot / box temps
    per_row = 2 * (2 * 4 + 4) + 12 * vocab + 48 * d_pad
    if block_n is None:
        block_n = _pick_block_n(
            n, per_row, target_rows=2048,
            budget_bytes=max(_tile_budget_bytes() - 2 * table_bytes, 1 << 20))
    assert block_n % _LANES == 0, "block_n must be a multiple of 128"
    num_blocks = pl.cdiv(n, block_n)

    out = pl.pallas_call(
        functools.partial(_nf1_fused_kernel, d_pad=d_pad),
        out_shape=jax.ShapeDtypeStruct((num_blocks, 1, block_n), jnp.float32),
        grid_spec=pltpu.PrefetchScalarGridSpec(
            num_scalar_prefetch=0,
            grid=(num_blocks,),
            in_specs=[
                # (idx_A, idx_B) block; partial last block is handled by Pallas
                pl.BlockSpec((2, block_n), lambda i: (0, i)),
                # resident tables: constant index_map -> fetched once per core.
                # TODO(synk): single-buffer via pipeline_mode=pl.Buffered(1)
                # once reliably supported; the 2x footprint is accounted for in
                # the fuse threshold / VMEM estimate instead.
                pl.BlockSpec((6 * d_pad, vocab), lambda i: (0, 0)),
            ],
            out_specs=pl.BlockSpec((1, 1, block_n), lambda i: (i, 0, 0)),
        ),
        compiler_params=pltpu.CompilerParams(
            dimension_semantics=("parallel",),
            vmem_limit_bytes=_vmem_limit_bytes(2 * table_bytes
                                               + block_n * per_row),
        ),
    )(xT, tables)
    # Lane-dense (num_blocks, 1, block_n) -> (N, 1); row (i, 0, j) == row i*bn+j.
    return out.reshape(num_blocks * block_n, 1)[:n]


def nf1_pred_pallas(min_a, max_a, min_b, max_b, *, block_n=None):
    """Streaming NF1 kernel over pre-gathered (N, D) boxes.  Returns (N, 1) f32."""
    n, d = min_a.shape
    per_row = (4 * 2 + 2) * d * 4 + 16      # 4 double-buffered inputs + temps
    if block_n is None:
        block_n = _pick_block_n(n, per_row,
                                target_rows=(512 * 1024) // (4 * d),
                                budget_bytes=_tile_budget_bytes())
    assert block_n % _LANES == 0, "block_n must be a multiple of 128"
    # No input padding: grid = cdiv(N, block_n); Pallas masks the partial block.
    num_blocks = pl.cdiv(n, block_n)
    box_spec = pl.BlockSpec((block_n, d), lambda i: (i, 0))

    return pl.pallas_call(
        _nf1_stream_kernel,
        out_shape=jax.ShapeDtypeStruct((n, 1), jnp.float32),
        grid_spec=pltpu.PrefetchScalarGridSpec(
            num_scalar_prefetch=0,
            grid=(num_blocks,),
            in_specs=[box_spec, box_spec, box_spec, box_spec],
            out_specs=pl.BlockSpec((block_n, 1), lambda i: (i, 0)),
        ),
        compiler_params=pltpu.CompilerParams(
            dimension_semantics=("parallel",),
            vmem_limit_bytes=_vmem_limit_bytes(block_n * per_row),
        ),
    )(min_a, max_a, min_b, max_b)


# ---------------------------------------------------------------------------
# Module port
# ---------------------------------------------------------------------------
class StatBoxEL:
    """JAX/Pallas port of the PyTorch StatBoxEL module (forward == NF1_pred)."""

    # TODO(synk): relation_mapping / NF3_loss / NF4_loss are `pass`/unused in
    # the reference forward; only the NF1_pred forward path is implemented.

    def __init__(self, size_dict, embed_dim, init_dict, key):
        k_min, k_max, k_rel = jax.random.split(key, 3)
        self.min_embeddings = self._init_embedding(
            k_min, size_dict["vocab"], embed_dim, init_dict["min_embed"])
        self.max_embeddings = self._init_embedding(
            k_max, size_dict["vocab"], embed_dim, init_dict["max_embed"])
        self.relation_embeddings = self._init_embedding(
            k_rel, size_dict["relation"], embed_dim, init_dict["relation"])

    @staticmethod
    def _init_embedding(key, vocab_size, embed_dim, init_value):
        lo, hi = init_value
        return jax.random.uniform(key, (vocab_size, embed_dim),
                                  dtype=jnp.float32, minval=lo, maxval=hi)

    def __call__(self, x, *, fuse_gather=None, block_n=None):
        vocab, d = self.min_embeddings.shape
        if fuse_gather is None:
            # Static (trace-time) decision: fuse whenever the double-buffered
            # resident tables fit comfortably in VMEM -- avoids the 4x (N, D)
            # gathered-box HBM round trip of the streaming path.
            d_pad = _fused_d_pad(d)
            table_db = 2 * 6 * d_pad * vocab * 4
            fuse_gather = (vocab <= 4096 and
                           table_db <= min(_vmem_capacity_bytes() // 4, 24 << 20))
        if fuse_gather:
            return nf1_pred_fused_pallas(self.min_embeddings,
                                         self.max_embeddings, x,
                                         block_n=block_n)
        # Big-vocab fallback: XLA gather outside + streaming Pallas kernel.
        idx_a = x[:, 0]
        idx_b = x[:, 1]
        min_a = jnp.take(self.min_embeddings, idx_a, axis=0)
        max_a = jnp.take(self.max_embeddings, idx_a, axis=0)
        min_b = jnp.take(self.min_embeddings, idx_b, axis=0)
        max_b = jnp.take(self.max_embeddings, idx_b, axis=0)
        return nf1_pred_pallas(min_a, max_a, min_b, max_b, block_n=block_n)


def _reference_nf1(min_emb, max_emb, x):
    idx_a, idx_b = x[:, 0], x[:, 1]
    min_a, max_a = min_emb[idx_a], max_emb[idx_a]
    min_b, max_b = min_emb[idx_b], max_emb[idx_b]
    inter_min = jnp.maximum(min_a, min_b)
    inter_max = jnp.minimum(max_a, max_b)
    vol_ab = jnp.prod(inter_max - inter_min, axis=1, keepdims=True)
    vol_a = jnp.prod(max_a - min_a, axis=1, keepdims=True)
    return vol_ab / vol_a


if __name__ == "__main__":
    key = jax.random.PRNGKey(0)
    k_model, k_idx = jax.random.split(key)

    vocab = 64
    n_relations = 4
    embed_dim = 32
    batch = 200          # not a multiple of 128 -> exercises partial blocks

    size_dict = {"vocab": vocab, "relation": n_relations}
    init_dict = {
        "min_embed": [1e-4, 0.5],
        "max_embed": [0.5, 1.0],
        "relation": [-0.1, 0.1],
    }

    model = StatBoxEL(size_dict, embed_dim, init_dict, k_model)
    x = jax.random.randint(k_idx, (batch, 2), minval=0, maxval=vocab,
                           dtype=jnp.int32)

    ref = _reference_nf1(model.min_embeddings, model.max_embeddings, x)

    # Default path: fused one-hot MXU gather, auto-sized block_n.
    pred = jax.block_until_ready(model(x))
    assert pred.shape == (batch, 1)
    assert jnp.allclose(pred, ref, rtol=1e-3, atol=1e-6), "fused path mismatch"

    # Fused path with an explicit small tile -> multi-block grid + partial block.
    pred_f128 = jax.block_until_ready(model(x, block_n=128))
    assert jnp.allclose(pred_f128, ref, rtol=1e-3, atol=1e-6), \
        "fused block_n=128 mismatch"

    # Streaming path (XLA gather outside + Pallas kernel): auto + explicit tiles.
    pred_stream = jax.block_until_ready(model(x, fuse_gather=False))
    assert pred_stream.shape == (batch, 1)
    assert jnp.allclose(pred_stream, ref, rtol=1e-3, atol=1e-6), \
        "streaming mismatch"

    pred_s128 = jax.block_until_ready(model(x, fuse_gather=False, block_n=128))
    assert jnp.allclose(pred_s128, ref, rtol=1e-3, atol=1e-6), \
        "streaming block_n=128 mismatch"

    # Wrappers are now jit-friendly (no device syncs / runtime compile probing).
    pred_jit = jax.block_until_ready(jax.jit(model.__call__)(x))
    assert jnp.allclose(pred_jit, ref, rtol=1e-3, atol=1e-6), "jit path mismatch"

    print("KERNEL_OK")
</pallas_src>

<mosaic_0001>
module attributes {stable_mosaic.version = 11 : i64} {
  func.func @_nf1_fused_kernel(%arg0: i32, %arg1: memref<2x256xi32, #tpu.memory_space<vmem>>, %arg2: memref<192x64xf32, #tpu.memory_space<vmem>>, %arg3: memref<1x1x256xf32, #tpu.memory_space<vmem>>) attributes {dimension_semantics = [#tpu.dimension_semantics<parallel>], iteration_bounds = array<i64: 1>, scalar_prefetch = 0 : i64, scratch_operands = 0 : i64, tpu.core_type = #tpu.core_type<tc>, window_params = [{transform_indices = @transform_0, window_bounds = array<i64: 2, 256>}, {pipeline_mode = #tpu.pipeline_mode<synchronous>, transform_indices = @transform_1, window_bounds = array<i64: 192, 64>}, {transform_indices = @transform_2, window_bounds = array<i64: 1, 1, 256>}]} {
    %c0 = arith.constant 0 : index
    %c0_0 = arith.constant 0 : index
    %0 = vector.load %arg1[%c0, %c0_0] : memref<2x256xi32, #tpu.memory_space<vmem>>, vector<1x256xi32>
    %c1 = arith.constant 1 : index
    %c0_1 = arith.constant 0 : index
    %1 = vector.load %arg1[%c1, %c0_1] : memref<2x256xi32, #tpu.memory_space<vmem>>, vector<1x256xi32>
    %c0_2 = arith.constant 0 : index
    %c0_3 = arith.constant 0 : index
    %2 = vector.load %arg2[%c0_2, %c0_3] : memref<192x64xf32, #tpu.memory_space<vmem>>, vector<192x64xf32>
    %3 = tpu.iota {dimensions = array<i32: 0>} : vector<64x256xi32>
    %4 = vector.broadcast %0 : vector<1x256xi32> to vector<64x256xi32>
    %5 = arith.cmpi eq, %3, %4 : vector<64x256xi32>
    %6 = arith.extui %5 : vector<64x256xi1> to vector<64x256xi32>
    %7 = arith.sitofp %6 : vector<64x256xi32> to vector<64x256xf32>
    %8 = vector.broadcast %1 : vector<1x256xi32> to vector<64x256xi32>
    %9 = arith.cmpi eq, %3, %8 : vector<64x256xi32>
    %10 = arith.extui %9 : vector<64x256xi1> to vector<64x256xi32>
    %11 = arith.sitofp %10 : vector<64x256xi32> to vector<64x256xf32>
    %cst = arith.constant dense<0.000000e+00> : vector<192x256xf32>
    %12 = tpu.matmul %2, %7, %cst {dimension_numbers = #tpu.dot_dimension_numbers<[1], [0], [0], [1], [0, 0, 1, 1], [], []>} : vector<192x64xf32>, vector<64x256xf32>, vector<192x256xf32> -> vector<192x256xf32>
    %cst_4 = arith.constant dense<0.000000e+00> : vector<192x256xf32>
    %13 = tpu.matmul %2, %11, %cst_4 {dimension_numbers = #tpu.dot_dimension_numbers<[1], [0], [0], [1], [0, 0, 1, 1], [], []>} : vector<192x64xf32>, vector<64x256xf32>, vector<192x256xf32> -> vector<192x256xf32>
    %14 = vector.extract_strided_slice %12 {offsets = [0, 0], sizes = [64, 256], strides = [1, 1]} : vector<192x256xf32> to vector<64x256xf32>
    %15 = vector.extract_strided_slice %12 {offsets = [64, 0], sizes = [64, 256], strides = [1, 1]} : vector<192x256xf32> to vector<64x256xf32>
    %16 = arith.addf %14, %15 : vector<64x256xf32>
    %17 = vector.extract_strided_slice %12 {offsets = [128, 0], sizes = [64, 256], strides = [1, 1]} : vector<192x256xf32> to vector<64x256xf32>
    %18 = arith.addf %16, %17 : vector<64x256xf32>
    %19 = vector.extract_strided_slice %13 {offsets = [0, 0], sizes = [64, 256], strides = [1, 1]} : vector<192x256xf32> to vector<64x256xf32>
    %20 = vector.extract_strided_slice %13 {offsets = [64, 0], sizes = [64, 256], strides = [1, 1]} : vector<192x256xf32> to vector<64x256xf32>
    %21 = arith.addf %19, %20 : vector<64x256xf32>
    %22 = vector.extract_strided_slice %13 {offsets = [128, 0], sizes = [64, 256], strides = [1, 1]} : vector<192x256xf32> to vector<64x256xf32>
    %23 = arith.addf %21, %22 : vector<64x256xf32>
    %24 = vector.extract_strided_slice %18 {offsets = [0, 0], sizes = [32, 256], strides = [1, 1]} : vector<64x256xf32> to vector<32x256xf32>
    %25 = vector.extract_strided_slice %18 {offsets = [32, 0], sizes = [32, 256], strides = [1, 1]} : vector<64x256xf32> to vector<32x256xf32>
    %26 = vector.extract_strided_slice %23 {offsets = [0, 0], sizes = [32, 256], strides = [1, 1]} : vector<64x256xf32> to vector<32x256xf32>
    %27 = vector.extract_strided_slice %23 {offsets = [32, 0], sizes = [32, 256], strides = [1, 1]} : vector<64x256xf32> to vector<32x256xf32>
    %28 = arith.maximumf %24, %26 : vector<32x256xf32>
    %29 = arith.minimumf %25, %27 : vector<32x256xf32>
    %30 = arith.subf %29, %28 : vector<32x256xf32>
    %31 = vector.extract_strided_slice %30 {offsets = [0, 0], sizes = [16, 256], strides = [1, 1]} : vector<32x256xf32> to vector<16x256xf32>
    %32 = vector.extract_strided_slice %30 {offsets = [16, 0], sizes = [16, 256], strides = [1, 1]} : vector<32x256xf32> to vector<16x256xf32>
    %33 = arith.mulf %31, %32 : vector<16x256xf32>
    %34 = vector.extract_strided_slice %33 {offsets = [0, 0], sizes = [8, 256], strides = [1, 1]} : vector<16x256xf32> to vector<8x256xf32>
    %35 = vector.extract_strided_slice %33 {offsets = [8, 0], sizes = [8, 256], strides = [1, 1]} : vector<16x256xf32> to vector<8x256xf32>
    %36 = arith.mulf %34, %35 : vector<8x256xf32>
    %37 = vector.extract_strided_slice %36 {offsets = [0, 0], sizes = [4, 256], strides = [1, 1]} : vector<8x256xf32> to vector<4x256xf32>
    %38 = vector.extract_strided_slice %36 {offsets = [4, 0], sizes = [4, 256], strides = [1, 1]} : vector<8x256xf32> to vector<4x256xf32>
    %39 = arith.mulf %37, %38 : vector<4x256xf32>
    %40 = vector.extract_strided_slice %39 {offsets = [0, 0], sizes = [2, 256], strides = [1, 1]} : vector<4x256xf32> to vector<2x256xf32>
    %41 = vector.extract_strided_slice %39 {offsets = [2, 0], sizes = [2, 256], strides = [1, 1]} : vector<4x256xf32> to vector<2x256xf32>
    %42 = arith.mulf %40, %41 : vector<2x256xf32>
    %43 = vector.extract_strided_slice %42 {offsets = [0, 0], sizes = [1, 256], strides = [1, 1]} : vector<2x256xf32> to vector<1x256xf32>
    %44 = vector.extract_strided_slice %42 {offsets = [1, 0], sizes = [1, 256], strides = [1, 1]} : vector<2x256xf32> to vector<1x256xf32>
    %45 = arith.mulf %43, %44 : vector<1x256xf32>
    %46 = arith.subf %25, %24 : vector<32x256xf32>
    %47 = vector.extract_strided_slice %46 {offsets = [0, 0], sizes = [16, 256], strides = [1, 1]} : vector<32x256xf32> to vector<16x256xf32>
    %48 = vector.extract_strided_slice %46 {offsets = [16, 0], sizes = [16, 256], strides = [1, 1]} : vector<32x256xf32> to vector<16x256xf32>
    %49 = arith.mulf %47, %48 : vector<16x256xf32>
    %50 = vector.extract_strided_slice %49 {offsets = [0, 0], sizes = [8, 256], strides = [1, 1]} : vector<16x256xf32> to vector<8x256xf32>
    %51 = vector.extract_strided_slice %49 {offsets = [8, 0], sizes = [8, 256], strides = [1, 1]} : vector<16x256xf32> to vector<8x256xf32>
    %52 = arith.mulf %50, %51 : vector<8x256xf32>
    %53 = vector.extract_strided_slice %52 {offsets = [0, 0], sizes = [4, 256], strides = [1, 1]} : vector<8x256xf32> to vector<4x256xf32>
    %54 = vector.extract_strided_slice %52 {offsets = [4, 0], sizes = [4, 256], strides = [1, 1]} : vector<8x256xf32> to vector<4x256xf32>
    %55 = arith.mulf %53, %54 : vector<4x256xf32>
    %56 = vector.extract_strided_slice %55 {offsets = [0, 0], sizes = [2, 256], strides = [1, 1]} : vector<4x256xf32> to vector<2x256xf32>
    %57 = vector.extract_strided_slice %55 {offsets = [2, 0], sizes = [2, 256], strides = [1, 1]} : vector<4x256xf32> to vector<2x256xf32>
    %58 = arith.mulf %56, %57 : vector<2x256xf32>
    %59 = vector.extract_strided_slice %58 {offsets = [0, 0], sizes = [1, 256], strides = [1, 1]} : vector<2x256xf32> to vector<1x256xf32>
    %60 = vector.extract_strided_slice %58 {offsets = [1, 0], sizes = [1, 256], strides = [1, 1]} : vector<2x256xf32> to vector<1x256xf32>
    %61 = arith.mulf %59, %60 : vector<1x256xf32>
    %62 = arith.divf %45, %61 : vector<1x256xf32>
    %63 = vector.shape_cast %62 : vector<1x256xf32> to vector<1x1x256xf32>
    %c0_5 = arith.constant 0 : index
    %c0_6 = arith.constant 0 : index
    %c0_7 = arith.constant 0 : index
    %64 = vector.load %arg3[%c0_5, %c0_6, %c0_7] : memref<1x1x256xf32, #tpu.memory_space<vmem>>, vector<1x1x256xf32>
    tpu.vector_store %arg3[%c0_5, %c0_6, %c0_7], %63 {strides = array<i32>} : memref<1x1x256xf32, #tpu.memory_space<vmem>>, vector<1x1x256xf32>,
    return
  }
  func.func @transform_0(%arg0: i32) -> (i32, i32) {
    %c0_i32 = arith.constant 0 : i32
    %c0_i32_0 = arith.constant 0 : i32
    return %c0_i32, %arg0 : i32, i32
  }
  func.func @transform_1(%arg0: i32) -> (i32, i32) {
    %c0_i32 = arith.constant 0 : i32
    %c0_i32_0 = arith.constant 0 : i32
    %c0_i32_1 = arith.constant 0 : i32
    return %c0_i32, %c0_i32_0 : i32, i32
  }
  func.func @transform_2(%arg0: i32) -> (i32, i32, i32) {
    %c0_i32 = arith.constant 0 : i32
    %c0_i32_0 = arith.constant 0 : i32
    %c0_i32_1 = arith.constant 0 : i32
    return %arg0, %c0_i32, %c0_i32_0 : i32, i32, i32
  }
}

</mosaic_0001>

<llo_original>
// kernel: tpu_custom_call.1
$region0: #{tpu_custom_call.1}
  #allocation0 [shape = 'u32[]', space=smem, size = 0x4, offset = 0x4, fixed_abs, tag = 'smem constant byte address 0x4 - core index']
  #allocation1 [shape = 'u32[144,128]{1,0:T(1,128)}', space=vmem, size = 0x12000, scoped, tag = 'internal scratch']
  %s0 = inlined_call_operand.vmem [shape: s32[2,200], index: 0, kind: input, shape index: {}]
  %s1 = inlined_call_operand.vmem [shape: f32[192,64], index: 1, kind: input, shape index: {}]
  %s2 = inlined_call_operand.hbm [shape: f32[1,1,256], index: 2, kind: output, shape index: {}]
  %s3 = sld [smem:[#allocation0]]
  $region18: #{tpu_custom_call.1} parent=0
    _
  %s5 = ssub.s32 1, %s3
  %s6 = scalar_select 0, %s5, %s3
  $region1: #{tpu_custom_call.1} parent=0
    #allocation2 [shape = 'u8[1024]{0}', space=vmem, size = 0x400, scoped, tag = 'output window, operand 0, single buffered']
    #allocation3 [shape = 's32[1]{0}', space=sflag, size = 0x4, scoped, tag = 'scoped memory for tpu_custom_call.1']
    %7 = vsyncpa [#allocation3], 0
    // Predicated region
    $region2: #{tpu_custom_call.1} parent=1 // pred_check
      _
    $region3: #{tpu_custom_call.1} parent=1 // pred_check_branch
      %9 = sbr.rel (0) target = $region5
    $region4: #{tpu_custom_call.1} parent=1 // pred_region
      _
    $region5: #{tpu_custom_call.1} parent=1 // pred_fallthru
      _
    // Predicated region
    $region6: #{tpu_custom_call.1} parent=1 // pred_check
      _
    $region7: #{tpu_custom_call.1} parent=1 // pred_check_branch
      %11 = sbr.rel (0) target = $region9
    $region8: #{tpu_custom_call.1} parent=1 // pred_region
      _
    $region9: #{tpu_custom_call.1} parent=1 // pred_fallthru
      _
    %v12 = vld [vmem:[%s0] ss:$2 sm:$0x3]
    %s13 = scalar_lea.vmem %s0, 1
    %v14 = vld [vmem:[%s13] ss:$2 sm:$0x3]
    %v15 = vld [vmem:[%s1] sm:$0xff]
    %v16 = vld [vmem:[%s1 + $0x8] sm:$0xff]
    %v17 = vld [vmem:[%s1 + $0x10] sm:$0xff]
    %v18 = vld [vmem:[%s1 + $0x18] sm:$0xff]
    %v19 = vld [vmem:[%s1 + $0x20] sm:$0xff]
    %v20 = vld [vmem:[%s1 + $0x28] sm:$0xff]
    %v21 = vld [vmem:[%s1 + $0x30] sm:$0xff]
    %v22 = vld [vmem:[%s1 + $0x38] sm:$0xff]
    %v23 = vld [vmem:[%s1 + $0x40] sm:$0xff]
    %v24 = vld [vmem:[%s1 + $0x48] sm:$0xff]
    %v25 = vld [vmem:[%s1 + $0x50] sm:$0xff]
    %v26 = vld [vmem:[%s1 + $0x58] sm:$0xff]
    %v27 = vld [vmem:[%s1 + $0x60] sm:$0xff]
    %v28 = vld [vmem:[%s1 + $0x68] sm:$0xff]
    %v29 = vld [vmem:[%s1 + $0x70] sm:$0xff]
    %v30 = vld [vmem:[%s1 + $0x78] sm:$0xff]
    %v31 = vld [vmem:[%s1 + $0x80] sm:$0xff]
    %v32 = vld [vmem:[%s1 + $0x88] sm:$0xff]
    %v33 = vld [vmem:[%s1 + $0x90] sm:$0xff]
    %v34 = vld [vmem:[%s1 + $0x98] sm:$0xff]
    %v35 = vld [vmem:[%s1 + $0xa0] sm:$0xff]
    %v36 = vld [vmem:[%s1 + $0xa8] sm:$0xff]
    %v37 = vld [vmem:[%s1 + $0xb0] sm:$0xff]
    %v38 = vld [vmem:[%s1 + $0xb8] sm:$0xff]
    %v39 = vlaneseq
    %v40 = vshrl.u32 %v39, 7
    %v41 = vadd.s32 %v40, 8
    %v42 = vadd.s32 %v40, 16
    %v43 = vadd.s32 %v40, 24
    %v44 = vadd.s32 %v40, 32
    %v45 = vadd.s32 %v40, 40
    %v46 = vadd.s32 %v40, 48
    %v47 = vadd.s32 %v40, 56
    %v48 = vlaneseq
    %v49 = vshrl.u32 %v48, 7
    %v50 = vsub.s32 0, %v49
    %v51 = vrot.slane %v12, %v50
    %v52 = vlaneseq
    %v53 = vshrl.u32 %v52, 7
    %v54 = vsub.s32 1, %v53
    %v55 = vrot.slane %v12, %v54
    %vm56 = vcmp.eq.s32.totalorder %v40, %v51
    %vm57 = vcmp.eq.s32.totalorder %v40, %v55
    %vm58 = vcmp.eq.s32.totalorder %v41, %v51
    %vm59 = vcmp.eq.s32.totalorder %v41, %v55
    %vm60 = vcmp.eq.s32.totalorder %v42, %v51
    %vm61 = vcmp.eq.s32.totalorder %v42, %v55
    %vm62 = vcmp.eq.s32.totalorder %v43, %v51
    %vm63 = vcmp.eq.s32.totalorder %v43, %v55
    %vm64 = vcmp.eq.s32.totalorder %v44, %v51
    %vm65 = vcmp.eq.s32.totalorder %v44, %v55
    %vm66 = vcmp.eq.s32.totalorder %v45, %v51
    %vm67 = vcmp.eq.s32.totalorder %v45, %v55
    %vm68 = vcmp.eq.s32.totalorder %v46, %v51
    %vm69 = vcmp.eq.s32.totalorder %v46, %v55
    %vm70 = vcmp.eq.s32.totalorder %v47, %v51
    %vm71 = vcmp.eq.s32.totalorder %v47, %v55
    %v72 = vsel %vm56, 1, 0
    %v73 = vsel %vm57, 1, 0
    %v74 = vsel %vm58, 1, 0
    %v75 = vsel %vm59, 1, 0
    %v76 = vsel %vm60, 1, 0
    %v77 = vsel %vm61, 1, 0
    %v78 = vsel %vm62, 1, 0
    %v79 = vsel %vm63, 1, 0
    %v80 = vsel %vm64, 1, 0
    %v81 = vsel %vm65, 1, 0
    %v82 = vsel %vm66, 1, 0
    %v83 = vsel %vm67, 1, 0
    %v84 = vsel %vm68, 1, 0
    %v85 = vsel %vm69, 1, 0
    %v86 = vsel %vm70, 1, 0
    %v87 = vsel %vm71, 1, 0
    %v88 = vcvt.s32.f32 %v72
    %v89 = vcvt.s32.f32 %v73
    %v90 = vcvt.s32.f32 %v74
    %v91 = vcvt.s32.f32 %v75
    %v92 = vcvt.s32.f32 %v76
    %v93 = vcvt.s32.f32 %v77
    %v94 = vcvt.s32.f32 %v78
    %v95 = vcvt.s32.f32 %v79
    %v96 = vcvt.s32.f32 %v80
    %v97 = vcvt.s32.f32 %v81
    %v98 = vcvt.s32.f32 %v82
    %v99 = vcvt.s32.f32 %v83
    %v100 = vcvt.s32.f32 %v84
    %v101 = vcvt.s32.f32 %v85
    %v102 = vcvt.s32.f32 %v86
    %v103 = vcvt.s32.f32 %v87
    %v104 = vlaneseq
    %v105 = vshrl.u32 %v104, 7
    %v106 = vsub.s32 0, %v105
    %v107 = vrot.slane %v14, %v106
    %v108 = vlaneseq
    %v109 = vshrl.u32 %v108, 7
    %v110 = vsub.s32 1, %v109
    %v111 = vrot.slane %v14, %v110
    %vm112 = vcmp.eq.s32.totalorder %v40, %v107
    %vm113 = vcmp.eq.s32.totalorder %v40, %v111
    %vm114 = vcmp.eq.s32.totalorder %v41, %v107
    %vm115 = vcmp.eq.s32.totalorder %v41, %v111
    %vm116 = vcmp.eq.s32.totalorder %v42, %v107
    %vm117 = vcmp.eq.s32.totalorder %v42, %v111
    %vm118 = vcmp.eq.s32.totalorder %v43, %v107
    %vm119 = vcmp.eq.s32.totalorder %v43, %v111
    %vm120 = vcmp.eq.s32.totalorder %v44, %v107
    %vm121 = vcmp.eq.s32.totalorder %v44, %v111
    %vm122 = vcmp.eq.s32.totalorder %v45, %v107
    %vm123 = vcmp.eq.s32.totalorder %v45, %v111
    %vm124 = vcmp.eq.s32.totalorder %v46, %v107
    %vm125 = vcmp.eq.s32.totalorder %v46, %v111
    %vm126 = vcmp.eq.s32.totalorder %v47, %v107
    %vm127 = vcmp.eq.s32.totalorder %v47, %v111
    %v128 = vsel %vm112, 1, 0
    %v129 = vsel %vm113, 1, 0
    %v130 = vsel %vm114, 1, 0
    %v131 = vsel %vm115, 1, 0
    %v132 = vsel %vm116, 1, 0
    %v133 = vsel %vm117, 1, 0
    %v134 = vsel %vm118, 1, 0
    %v135 = vsel %vm119, 1, 0
    %v136 = vsel %vm120, 1, 0
    %v137 = vsel %vm121, 1, 0
    %v138 = vsel %vm122, 1, 0
    %v139 = vsel %vm123, 1, 0
    %v140 = vsel %vm124, 1, 0
    %v141 = vsel %vm125, 1, 0
    %v142 = vsel %vm126, 1, 0
    %v143 = vsel %vm127, 1, 0
    %v144 = vcvt.s32.f32 %v128
    %v145 = vcvt.s32.f32 %v129
    %v146 = vcvt.s32.f32 %v130
    %v147 = vcvt.s32.f32 %v131
    %v148 = vcvt.s32.f32 %v132
    %v149 = vcvt.s32.f32 %v133
    %v150 = vcvt.s32.f32 %v134
    %v151 = vcvt.s32.f32 %v135
    %v152 = vcvt.s32.f32 %v136
    %v153 = vcvt.s32.f32 %v137
    %v154 = vcvt.s32.f32 %v138
    %v155 = vcvt.s32.f32 %v139
    %v156 = vcvt.s32.f32 %v140
    %v157 = vcvt.s32.f32 %v141
    %v158 = vcvt.s32.f32 %v142
    %v159 = vcvt.s32.f32 %v143
    %vm160 = vcmask 523264
    %v162 = vsel %vm160, %v15, 0
    %v165 = vsel %vm160, %v16, 0
    %v168 = vsel %vm160, %v17, 0
    %v171 = vsel %vm160, %v18, 0
    %v174 = vsel %vm160, %v19, 0
    %v177 = vsel %vm160, %v20, 0
    %v180 = vsel %vm160, %v21, 0
    %v183 = vsel %vm160, %v22, 0
    %v186 = vsel %vm160, %v23, 0
    %v189 = vsel %vm160, %v24, 0
    %v192 = vsel %vm160, %v25, 0
    %v195 = vsel %vm160, %v26, 0
    %v198 = vsel %vm160, %v27, 0
    %v201 = vsel %vm160, %v28, 0
    %v204 = vsel %vm160, %v29, 0
    %v207 = vsel %vm160, %v30, 0
    %v210 = vsel %vm160, %v31, 0
    %v213 = vsel %vm160, %v32, 0
    %v216 = vsel %vm160, %v33, 0
    %v219 = vsel %vm160, %v34, 0
    %v222 = vsel %vm160, %v35, 0
    %v225 = vsel %vm160, %v36, 0
    %v228 = vsel %vm160, %v37, 0
    %v231 = vsel %vm160, %v38, 0
    %233 = vmatprep.subr.mxu0 %v89
    %234 = vmatpush1.msra.mxu0 %v88
    %235 = vmatprep.subr.mxu0 %v91
    %236 = vmatpush1.msra.mxu0 %v90
    %237 = vmatprep.subr.mxu0 %v93
    %238 = vmatpush1.msra.mxu0 %v92
    %239 = vmatprep.subr.mxu0 %v95
    %240 = vmatpush1.msra.mxu0 %v94
    %241 = vmatprep.subr.mxu0 %v97
    %242 = vmatpush1.msra.mxu0 %v96
    %243 = vmatprep.subr.mxu0 %v99
    %244 = vmatpush1.msra.mxu0 %v98
    %245 = vmatprep.subr.mxu0 %v101
    %246 = vmatpush1.msra.mxu0 %v100
    %247 = vmatprep.subr.mxu0 %v103
    %248 = vmatpush1.msra.mxu0 %v102
    %249 = vmatprep.subr.mxu0 0.0
    %250 = vmatpush1.msra.mxu0 0.0
    %251 = vmatprep.subr.mxu0 0.0
    %252 = vmatpush1.msra.mxu0 0.0
    %253 = vmatprep.subr.mxu0 0.0
    %254 = vmatpush1.msra.mxu0 0.0
    %255 = vmatprep.subr.mxu0 0.0
    %256 = vmatpush1.msra.mxu0 0.0
    %257 = vmatprep.subr.mxu0 0.0
    %258 = vmatpush1.msra.mxu0 0.0
    %259 = vmatprep.subr.mxu0 0.0
    %260 = vmatpush1.msra.mxu0 0.0
    %261 = vmatprep.subr.mxu0 0.0
    %262 = vmatpush1.msra.mxu0 0.0
    %263 = vmatprep.subr.mxu0 0.0
    %264 = vmatpush1.msra.mxu0 0.0
    %265 = vmatprep.subr.mxu0 0.0
    %266 = vmatpush1.msra.mxu0 0.0
    %267 = vmatprep.subr.mxu0 0.0
    %268 = vmatpush1.msra.mxu0 0.0
    %269 = vmatprep.subr.mxu0 0.0
    %270 = vmatpush1.msra.mxu0 0.0
    %271 = vmatprep.subr.mxu0 0.0
    %272 = vmatpush1.msra.mxu0 0.0
    %273 = vmatprep.subr.mxu0 0.0
    %274 = vmatpush1.msra.mxu0 0.0
    %275 = vmatprep.subr.mxu0 0.0
    %276 = vmatpush1.msra.mxu0 0.0
    %277 = vmatprep.subr.mxu0 0.0
    %278 = vmatpush1.msra.mxu0 0.0
    %279 = vmatprep.subr.mxu0 0.0
    %280 = vmatpush1.msra.mxu0 0.0
    %281 = vmatprep.subr.mxu0 0.0
    %282 = vmatpush1.msra.mxu0 0.0
    %283 = vmatprep.subr.mxu0 0.0
    %284 = vmatpush1.msra.mxu0 0.0
    %285 = vmatprep.subr.mxu0 0.0
    %286 = vmatpush1.msra.mxu0 0.0
    %287 = vmatprep.subr.mxu0 0.0
    %288 = vmatpush1.msra.mxu0 0.0
    %289 = vmatprep.subr.mxu0 0.0
    %290 = vmatpush1.msra.mxu0 0.0
    %291 = vmatprep.subr.mxu0 0.0
    %292 = vmatpush1.msra.mxu0 0.0
    %293 = vmatprep.subr.mxu0 0.0
    %294 = vmatpush1.msra.mxu0 0.0
    %295 = vmatprep.subr.mxu0 0.0
    %296 = vmatpush1.msra.mxu0 0.0
    %297 = vmatprep.mubr.f32.mxu0 0.0
    %298 = vmatmul.mubr.f32.gmra.mrb[0].mxu0 %v162
    %v299 = vpop.f32.mrb[0].mxu0
    %v300 = vadd.f32 0.0, %v299
    %v301 = vpop.f32.mrb[0].mxu0
    %v302 = vadd.f32 0.0, %v301
    %303 = vmatprep.mubr.f32.mxu0 0.0
    %304 = vmatmul.mubr.f32.gmra.mrb[0].mxu0 %v165
    %v305 = vpop.f32.mrb[0].mxu0
    %v306 = vadd.f32 0.0, %v305
    %v307 = vpop.f32.mrb[0].mxu0
    %v308 = vadd.f32 0.0, %v307
    %309 = vmatprep.mubr.f32.mxu0 0.0
    %310 = vmatmul.mubr.f32.gmra.mrb[0].mxu0 %v168
    %v311 = vpop.f32.mrb[0].mxu0
    %v312 = vadd.f32 0.0, %v311
    %v313 = vpop.f32.mrb[0].mxu0
    %v314 = vadd.f32 0.0, %v313
    %315 = vmatprep.mubr.f32.mxu0 0.0
    %316 = vmatmul.mubr.f32.gmra.mrb[0].mxu0 %v171
    %v317 = vpop.f32.mrb[0].mxu0
    %v318 = vadd.f32 0.0, %v317
    %v319 = vpop.f32.mrb[0].mxu0
    %v320 = vadd.f32 0.0, %v319
    %321 = vmatprep.mubr.f32.mxu0 0.0
    %322 = vmatmul.mubr.f32.gmra.mrb[0].mxu0 %v174
    %v323 = vpop.f32.mrb[0].mxu0
    %v324 = vadd.f32 0.0, %v323
    %v325 = vpop.f32.mrb[0].mxu0
    %v326 = vadd.f32 0.0, %v325
    %327 = vmatprep.mubr.f32.mxu0 0.0
    %328 = vmatmul.mubr.f32.gmra.mrb[0].mxu0 %v177
    %v329 = vpop.f32.mrb[0].mxu0
    %v330 = vadd.f32 0.0, %v329
    %v331 = vpop.f32.mrb[0].mxu0
    %v332 = vadd.f32 0.0, %v331
    %333 = vmatprep.mubr.f32.mxu0 0.0
    %334 = vmatmul.mubr.f32.gmra.mrb[0].mxu0 %v180
    %v335 = vpop.f32.mrb[0].mxu0
    %v336 = vadd.f32 0.0, %v335
    %v337 = vpop.f32.mrb[0].mxu0
    %v338 = vadd.f32 0.0, %v337
    %339 = vmatprep.mubr.f32.mxu0 0.0
    %340 = vmatmul.mubr.f32.gmra.mrb[0].mxu0 %v183
    %v341 = vpop.f32.mrb[0].mxu0
    %v342 = vadd.f32 0.0, %v341
    %v343 = vpop.f32.mrb[0].mxu0
    %v344 = vadd.f32 0.0, %v343
    %345 = vmatprep.mubr.f32.mxu0 0.0
    %346 = vmatmul.mubr.f32.gmra.mrb[0].mxu0 %v186
    %v347 = vpop.f32.mrb[0].mxu0
    %v348 = vadd.f32 0.0, %v347
    %v349 = vpop.f32.mrb[0].mxu0
    %v350 = vadd.f32 0.0, %v349
    %351 = vmatprep.mubr.f32.mxu0 0.0
    %352 = vmatmul.mubr.f32.gmra.mrb[0].mxu0 %v189
    %v353 = vpop.f32.mrb[0].mxu0
    %v354 = vadd.f32 0.0, %v353
    %v355 = vpop.f32.mrb[0].mxu0
    %v356 = vadd.f32 0.0, %v355
    %357 = vmatprep.mubr.f32.mxu0 0.0
    %358 = vmatmul.mubr.f32.gmra.mrb[0].mxu0 %v192
    %v359 = vpop.f32.mrb[0].mxu0
    %v360 = vadd.f32 0.0, %v359
    %v361 = vpop.f32.mrb[0].mxu0
    %v362 = vadd.f32 0.0, %v361
    %363 = vmatprep.mubr.f32.mxu0 0.0
    %364 = vmatmul.mubr.f32.gmra.mrb[0].mxu0 %v195
    %v365 = vpop.f32.mrb[0].mxu0
    %v366 = vadd.f32 0.0, %v365
    %v367 = vpop.f32.mrb[0].mxu0
    %v368 = vadd.f32 0.0, %v367
    %369 = vmatprep.mubr.f32.mxu0 0.0
    %370 = vmatmul.mubr.f32.gmra.mrb[0].mxu0 %v198
    %v371 = vpop.f32.mrb[0].mxu0
    %v372 = vadd.f32 0.0, %v371
    %v373 = vpop.f32.mrb[0].mxu0
    %v374 = vadd.f32 0.0, %v373
    %375 = vmatprep.mubr.f32.mxu0 0.0
    %376 = vmatmul.mubr.f32.gmra.mrb[0].mxu0 %v201
    %v377 = vpop.f32.mrb[0].mxu0
    %v378 = vadd.f32 0.0, %v377
    %v379 = vpop.f32.mrb[0].mxu0
    %v380 = vadd.f32 0.0, %v379
    %381 = vmatprep.mubr.f32.mxu0 0.0
    %382 = vmatmul.mubr.f32.gmra.mrb[0].mxu0 %v204
    %v383 = vpop.f32.mrb[0].mxu0
    %v384 = vadd.f32 0.0, %v383
    %v385 = vpop.f32.mrb[0].mxu0
    %v386 = vadd.f32 0.0, %v385
    %387 = vmatprep.mubr.f32.mxu0 0.0
    %388 = vmatmul.mubr.f32.gmra.mrb[0].mxu0 %v207
    %v389 = vpop.f32.mrb[0].mxu0
    %v390 = vadd.f32 0.0, %v389
    %v391 = vpop.f32.mrb[0].mxu0
    %v392 = vadd.f32 0.0, %v391
    %393 = vmatprep.mubr.f32.mxu0 0.0
    %394 = vmatmul.mubr.f32.gmra.mrb[0].mxu0 %v210
    %v395 = vpop.f32.mrb[0].mxu0
    %v396 = vadd.f32 0.0, %v395
    %v397 = vpop.f32.mrb[0].mxu0
    %v398 = vadd.f32 0.0, %v397
    %399 = vmatprep.mubr.f32.mxu0 0.0
    %400 = vmatmul.mubr.f32.gmra.mrb[0].mxu0 %v213
    %v401 = vpop.f32.mrb[0].mxu0
    %v402 = vadd.f32 0.0, %v401
    %v403 = vpop.f32.mrb[0].mxu0
    %v404 = vadd.f32 0.0, %v403
    %405 = vmatprep.mubr.f32.mxu0 0.0
    %406 = vmatmul.mubr.f32.gmra.mrb[0].mxu0 %v216
    %v407 = vpop.f32.mrb[0].mxu0
    %v408 = vadd.f32 0.0, %v407
    %v409 = vpop.f32.mrb[0].mxu0
    %v410 = vadd.f32 0.0, %v409
    %411 = vmatprep.mubr.f32.mxu0 0.0
    %412 = vmatmul.mubr.f32.gmra.mrb[0].mxu0 %v219
    %v413 = vpop.f32.mrb[0].mxu0
    %v414 = vadd.f32 0.0, %v413
    %v415 = vpop.f32.mrb[0].mxu0
    %v416 = vadd.f32 0.0, %v415
    %417 = vmatprep.mubr.f32.mxu0 0.0
    %418 = vmatmul.mubr.f32.gmra.mrb[0].mxu0 %v222
    %v419 = vpop.f32.mrb[0].mxu0
    %v420 = vadd.f32 0.0, %v419
    %v421 = vpop.f32.mrb[0].mxu0
    %v422 = vadd.f32 0.0, %v421
    %423 = vmatprep.mubr.f32.mxu0 0.0
    %424 = vmatmul.mubr.f32.gmra.mrb[0].mxu0 %v225
    %v425 = vpop.f32.mrb[0].mxu0
    %v426 = vadd.f32 0.0, %v425
    %v427 = vpop.f32.mrb[0].mxu0
    %v428 = vadd.f32 0.0, %v427
    %429 = vmatprep.mubr.f32.mxu0 0.0
    %430 = vmatmul.mubr.f32.gmra.mrb[0].mxu0 %v228
    %v431 = vpop.f32.mrb[0].mxu0
    %v432 = vadd.f32 0.0, %v431
    %v433 = vpop.f32.mrb[0].mxu0
    %v434 = vadd.f32 0.0, %v433
    %435 = vmatprep.mubr.f32.mxu0 0.0
    %436 = vmatmul.mubr.f32.gmra.mrb[0].mxu0 %v231
    %v437 = vpop.f32.mrb[0].mxu0
    %v438 = vadd.f32 0.0, %v437
    %v439 = vpop.f32.mrb[0].mxu0
    %v440 = vadd.f32 0.0, %v439
    %441 = vdwg.mxu0
    %442 = vmatprep.subr.mxu0 %v145
    %443 = vmatpush1.msra.mxu0 %v144
    %444 = vmatprep.subr.mxu0 %v147
    %445 = vmatpush1.msra.mxu0 %v146
    %446 = vmatprep.subr.mxu0 %v149
    %447 = vmatpush1.msra.mxu0 %v148
    %448 = vmatprep.subr.mxu0 %v151
    %449 = vmatpush1.msra.mxu0 %v150
    %450 = vmatprep.subr.mxu0 %v153
    %451 = vmatpush1.msra.mxu0 %v152
    %452 = vmatprep.subr.mxu0 %v155
    %453 = vmatpush1.msra.mxu0 %v154
    %454 = vmatprep.subr.mxu0 %v157
    %455 = vmatpush1.msra.mxu0 %v156
    %456 = vmatprep.subr.mxu0 %v159
    %457 = vmatpush1.msra.mxu0 %v158
    %458 = vmatprep.subr.mxu0 0.0
    %459 = vmatpush1.msra.mxu0 0.0
    %460 = vmatprep.subr.mxu0 0.0
    %461 = vmatpush1.msra.mxu0 0.0
    %462 = vmatprep.subr.mxu0 0.0
    %463 = vmatpush1.msra.mxu0 0.0
    %464 = vmatprep.subr.mxu0 0.0
    %465 = vmatpush1.msra.mxu0 0.0
    %466 = vmatprep.subr.mxu0 0.0
    %467 = vmatpush1.msra.mxu0 0.0
    %468 = vmatprep.subr.mxu0 0.0
    %469 = vmatpush1.msra.mxu0 0.0
    %470 = vmatprep.subr.mxu0 0.0
    %471 = vmatpush1.msra.mxu0 0.0
    %472 = vmatprep.subr.mxu0 0.0
    %473 = vmatpush1.msra.mxu0 0.0
    %474 = vmatprep.subr.mxu0 0.0
    %475 = vmatpush1.msra.mxu0 0.0
    %476 = vmatprep.subr.mxu0 0.0
    %477 = vmatpush1.msra.mxu0 0.0
    %478 = vmatprep.subr.mxu0 0.0
    %479 = vmatpush1.msra.mxu0 0.0
    %480 = vmatprep.subr.mxu0 0.0
    %481 = vmatpush1.msra.mxu0 0.0
    %482 = vmatprep.subr.mxu0 0.0
    %483 = vmatpush1.msra.mxu0 0.0
    %484 = vmatprep.subr.mxu0 0.0
    %485 = vmatpush1.msra.mxu0 0.0
    %486 = vmatprep.subr.mxu0 0.0
    %487 = vmatpush1.msra.mxu0 0.0
    %488 = vmatprep.subr.mxu0 0.0
    %489 = vmatpush1.msra.mxu0 0.0
    %490 = vmatprep.subr.mxu0 0.0
    %491 = vmatpush1.msra.mxu0 0.0
    %492 = vmatprep.subr.mxu0 0.0
    %493 = vmatpush1.msra.mxu0 0.0
    %494 = vmatprep.subr.mxu0 0.0
    %495 = vmatpush1.msra.mxu0 0.0
    %496 = vmatprep.subr.mxu0 0.0
    %497 = vmatpush1.msra.mxu0 0.0
    %498 = vmatprep.subr.mxu0 0.0
    %499 = vmatpush1.msra.mxu0 0.0
    %500 = vmatprep.subr.mxu0 0.0
    %501 = vmatpush1.msra.mxu0 0.0
    %502 = vmatprep.subr.mxu0 0.0
    %503 = vmatpush1.msra.mxu0 0.0
    %504 = vmatprep.subr.mxu0 0.0
    %505 = vmatpush1.msra.mxu0 0.0
    %506 = vmatprep.mubr.f32.mxu0 0.0
    %507 = vmatmul.mubr.f32.gmra.mrb[0].mxu0 %v162
    %v508 = vpop.f32.mrb[0].mxu0
    %v509 = vadd.f32 0.0, %v508
    %v510 = vpop.f32.mrb[0].mxu0
    %v511 = vadd.f32 0.0, %v510
    %512 = vmatprep.mubr.f32.mxu0 0.0
    %513 = vmatmul.mubr.f32.gmra.mrb[0].mxu0 %v165
    %v514 = vpop.f32.mrb[0].mxu0
    %v515 = vadd.f32 0.0, %v514
    %v516 = vpop.f32.mrb[0].mxu0
    %v517 = vadd.f32 0.0, %v516
    %518 = vmatprep.mubr.f32.mxu0 0.0
    %519 = vmatmul.mubr.f32.gmra.mrb[0].mxu0 %v168
    %v520 = vpop.f32.mrb[0].mxu0
    %v521 = vadd.f32 0.0, %v520
    %v522 = vpop.f32.mrb[0].mxu0
    %v523 = vadd.f32 0.0, %v522
    %524 = vmatprep.mubr.f32.mxu0 0.0
    %525 = vmatmul.mubr.f32.gmra.mrb[0].mxu0 %v171
    %v526 = vpop.f32.mrb[0].mxu0
    %v527 = vadd.f32 0.0, %v526
    %v528 = vpop.f32.mrb[0].mxu0
    %v529 = vadd.f32 0.0, %v528
    %530 = vmatprep.mubr.f32.mxu0 0.0
    %531 = vmatmul.mubr.f32.gmra.mrb[0].mxu0 %v174
    %v532 = vpop.f32.mrb[0].mxu0
    %v533 = vadd.f32 0.0, %v532
    %v534 = vpop.f32.mrb[0].mxu0
    %v535 = vadd.f32 0.0, %v534
    %536 = vmatprep.mubr.f32.mxu0 0.0
    %537 = vmatmul.mubr.f32.gmra.mrb[0].mxu0 %v177
    %v538 = vpop.f32.mrb[0].mxu0
    %v539 = vadd.f32 0.0, %v538
    %v540 = vpop.f32.mrb[0].mxu0
    %v541 = vadd.f32 0.0, %v540
    %542 = vmatprep.mubr.f32.mxu0 0.0
    %543 = vmatmul.mubr.f32.gmra.mrb[0].mxu0 %v180
    %v544 = vpop.f32.mrb[0].mxu0
    %v545 = vadd.f32 0.0, %v544
    %v546 = vpop.f32.mrb[0].mxu0
    %v547 = vadd.f32 0.0, %v546
    %548 = vmatprep.mubr.f32.mxu0 0.0
    %549 = vmatmul.mubr.f32.gmra.mrb[0].mxu0 %v183
    %v550 = vpop.f32.mrb[0].mxu0
    %v551 = vadd.f32 0.0, %v550
    %v552 = vpop.f32.mrb[0].mxu0
    %v553 = vadd.f32 0.0, %v552
    %554 = vmatprep.mubr.f32.mxu0 0.0
    %555 = vmatmul.mubr.f32.gmra.mrb[0].mxu0 %v186
    %v556 = vpop.f32.mrb[0].mxu0
    %v557 = vadd.f32 0.0, %v556
    %v558 = vpop.f32.mrb[0].mxu0
    %v559 = vadd.f32 0.0, %v558
    %560 = vmatprep.mubr.f32.mxu0 0.0
    %561 = vmatmul.mubr.f32.gmra.mrb[0].mxu0 %v189
    %v562 = vpop.f32.mrb[0].mxu0
    %v563 = vadd.f32 0.0, %v562
    %v564 = vpop.f32.mrb[0].mxu0
    %v565 = vadd.f32 0.0, %v564
    %566 = vmatprep.mubr.f32.mxu0 0.0
    %567 = vmatmul.mubr.f32.gmra.mrb[0].mxu0 %v192
    %v568 = vpop.f32.mrb[0].mxu0
    %v569 = vadd.f32 0.0, %v568
    %v570 = vpop.f32.mrb[0].mxu0
    %v571 = vadd.f32 0.0, %v570
    %572 = vmatprep.mubr.f32.mxu0 0.0
    %573 = vmatmul.mubr.f32.gmra.mrb[0].mxu0 %v195
    %v574 = vpop.f32.mrb[0].mxu0
    %v575 = vadd.f32 0.0, %v574
    %v576 = vpop.f32.mrb[0].mxu0
    %v577 = vadd.f32 0.0, %v576
    %578 = vmatprep.mubr.f32.mxu0 0.0
    %579 = vmatmul.mubr.f32.gmra.mrb[0].mxu0 %v198
    %v580 = vpop.f32.mrb[0].mxu0
    %v581 = vadd.f32 0.0, %v580
    %v582 = vpop.f32.mrb[0].mxu0
    %v583 = vadd.f32 0.0, %v582
    %584 = vmatprep.mubr.f32.mxu0 0.0
    %585 = vmatmul.mubr.f32.gmra.mrb[0].mxu0 %v201
    %v586 = vpop.f32.mrb[0].mxu0
    %v587 = vadd.f32 0.0, %v586
    %v588 = vpop.f32.mrb[0].mxu0
    %v589 = vadd.f32 0.0, %v588
    %590 = vmatprep.mubr.f32.mxu0 0.0
    %591 = vmatmul.mubr.f32.gmra.mrb[0].mxu0 %v204
    %v592 = vpop.f32.mrb[0].mxu0
    %v593 = vadd.f32 0.0, %v592
    %v594 = vpop.f32.mrb[0].mxu0
    %v595 = vadd.f32 0.0, %v594
    %596 = vmatprep.mubr.f32.mxu0 0.0
    %597 = vmatmul.mubr.f32.gmra.mrb[0].mxu0 %v207
    %v598 = vpop.f32.mrb[0].mxu0
    %v599 = vadd.f32 0.0, %v598
    %v600 = vpop.f32.mrb[0].mxu0
    %v601 = vadd.f32 0.0, %v600
    %602 = vmatprep.mubr.f32.mxu0 0.0
    %603 = vmatmul.mubr.f32.gmra.mrb[0].mxu0 %v210
    %v604 = vpop.f32.mrb[0].mxu0
    %v605 = vadd.f32 0.0, %v604
    %v606 = vpop.f32.mrb[0].mxu0
    %v607 = vadd.f32 0.0, %v606
    %608 = vmatprep.mubr.f32.mxu0 0.0
    %609 = vmatmul.mubr.f32.gmra.mrb[0].mxu0 %v213
    %v610 = vpop.f32.mrb[0].mxu0
    %v611 = vadd.f32 0.0, %v610
    %v612 = vpop.f32.mrb[0].mxu0
    %v613 = vadd.f32 0.0, %v612
    %614 = vmatprep.mubr.f32.mxu0 0.0
    %615 = vmatmul.mubr.f32.gmra.mrb[0].mxu0 %v216
    %v616 = vpop.f32.mrb[0].mxu0
    %v617 = vadd.f32 0.0, %v616
    %v618 = vpop.f32.mrb[0].mxu0
    %v619 = vadd.f32 0.0, %v618
    %620 = vmatprep.mubr.f32.mxu0 0.0
    %621 = vmatmul.mubr.f32.gmra.mrb[0].mxu0 %v219
    %v622 = vpop.f32.mrb[0].mxu0
    %v623 = vadd.f32 0.0, %v622
    %v624 = vpop.f32.mrb[0].mxu0
    %v625 = vadd.f32 0.0, %v624
    %626 = vmatprep.mubr.f32.mxu0 0.0
    %627 = vmatmul.mubr.f32.gmra.mrb[0].mxu0 %v222
    %v628 = vpop.f32.mrb[0].mxu0
    %v629 = vadd.f32 0.0, %v628
    %v630 = vpop.f32.mrb[0].mxu0
    %v631 = vadd.f32 0.0, %v630
    %632 = vmatprep.mubr.f32.mxu0 0.0
    %633 = vmatmul.mubr.f32.gmra.mrb[0].mxu0 %v225
    %v634 = vpop.f32.mrb[0].mxu0
    %v635 = vadd.f32 0.0, %v634
    %v636 = vpop.f32.mrb[0].mxu0
    %v637 = vadd.f32 0.0, %v636
    %638 = vmatprep.mubr.f32.mxu0 0.0
    %639 = vmatmul.mubr.f32.gmra.mrb[0].mxu0 %v228
    %v640 = vpop.f32.mrb[0].mxu0
    %v641 = vadd.f32 0.0, %v640
    %v642 = vpop.f32.mrb[0].mxu0
    %v643 = vadd.f32 0.0, %v642
    %644 = vmatprep.mubr.f32.mxu0 0.0
    %645 = vmatmul.mubr.f32.gmra.mrb[0].mxu0 %v231
    %v646 = vpop.f32.mrb[0].mxu0
    %v647 = vadd.f32 0.0, %v646
    %v648 = vpop.f32.mrb[0].mxu0
    %v649 = vadd.f32 0.0, %v648
    %650 = vdwg.mxu0
    %v651 = vadd.f32 %v300, %v348
    %v652 = vadd.f32 %v302, %v350
    %v653 = vadd.f32 %v306, %v354
    %v654 = vadd.f32 %v308, %v356
    %v655 = vadd.f32 %v312, %v360
    %v656 = vadd.f32 %v314, %v362
    %v657 = vadd.f32 %v318, %v366
    %v658 = vadd.f32 %v320, %v368
    %v659 = vadd.f32 %v324, %v372
    %v660 = vadd.f32 %v326, %v374
    %v661 = vadd.f32 %v330, %v378
    %v662 = vadd.f32 %v332, %v380
    %v663 = vadd.f32 %v336, %v384
    %v664 = vadd.f32 %v338, %v386
    %v665 = vadd.f32 %v342, %v390
    %v666 = vadd.f32 %v344, %v392
    %v667 = vadd.f32 %v651, %v396
    %v668 = vadd.f32 %v652, %v398
    %v669 = vadd.f32 %v653, %v402
    %v670 = vadd.f32 %v654, %v404
    %v671 = vadd.f32 %v655, %v408
    %v672 = vadd.f32 %v656, %v410
    %v673 = vadd.f32 %v657, %v414
    %v674 = vadd.f32 %v658, %v416
    %v675 = vadd.f32 %v659, %v420
    %v676 = vadd.f32 %v660, %v422
    %v677 = vadd.f32 %v661, %v426
    %v678 = vadd.f32 %v662, %v428
    %v679 = vadd.f32 %v663, %v432
    %v680 = vadd.f32 %v664, %v434
    %v681 = vadd.f32 %v665, %v438
    %v682 = vadd.f32 %v666, %v440
    %v683 = vadd.f32 %v509, %v557
    %v684 = vadd.f32 %v511, %v559
    %v685 = vadd.f32 %v515, %v563
    %v686 = vadd.f32 %v517, %v565
    %v687 = vadd.f32 %v521, %v569
    %v688 = vadd.f32 %v523, %v571
    %v689 = vadd.f32 %v527, %v575
    %v690 = vadd.f32 %v529, %v577
    %v691 = vadd.f32 %v533, %v581
    %v692 = vadd.f32 %v535, %v583
    %v693 = vadd.f32 %v539, %v587
    %v694 = vadd.f32 %v541, %v589
    %v695 = vadd.f32 %v545, %v593
    %v696 = vadd.f32 %v547, %v595
    %v697 = vadd.f32 %v551, %v599
    %v698 = vadd.f32 %v553, %v601
    %v699 = vadd.f32 %v683, %v605
    %v700 = vadd.f32 %v684, %v607
    %v701 = vadd.f32 %v685, %v611
    %v702 = vadd.f32 %v686, %v613
    %v703 = vadd.f32 %v687, %v617
    %v704 = vadd.f32 %v688, %v619
    %v705 = vadd.f32 %v689, %v623
    %v706 = vadd.f32 %v690, %v625
    %v707 = vadd.f32 %v691, %v629
    %v708 = vadd.f32 %v692, %v631
    %v709 = vadd.f32 %v693, %v635
    %v710 = vadd.f32 %v694, %v637
    %v711 = vadd.f32 %v695, %v641
    %v712 = vadd.f32 %v696, %v643
    %v713 = vadd.f32 %v697, %v647
    %v714 = vadd.f32 %v698, %v649
    %v715 = vmax.f32 %v667, %v699
    %v716 = vmax.f32 %v668, %v700
    %v717 = vmax.f32 %v669, %v701
    %v718 = vmax.f32 %v670, %v702
    %v719 = vmax.f32 %v671, %v703
    %v720 = vmax.f32 %v672, %v704
    %v721 = vmax.f32 %v673, %v705
    %v722 = vmax.f32 %v674, %v706
    %v723 = vmin.f32 %v675, %v707
    %v724 = vmin.f32 %v676, %v708
    %v725 = vmin.f32 %v677, %v709
    %v726 = vmin.f32 %v678, %v710
    %v727 = vmin.f32 %v679, %v711
    %v728 = vmin.f32 %v680, %v712
    %v729 = vmin.f32 %v681, %v713
    %v730 = vmin.f32 %v682, %v714
    %v731 = vsub.f32 %v723, %v715
    %v732 = vsub.f32 %v724, %v716
    %v733 = vsub.f32 %v725, %v717
    %v734 = vsub.f32 %v726, %v718
    %v735 = vsub.f32 %v727, %v719
    %v736 = vsub.f32 %v728, %v720
    %v737 = vsub.f32 %v729, %v721
    %v738 = vsub.f32 %v730, %v722
    %v739 = vmul.f32 %v731, %v735
    %v740 = vmul.f32 %v732, %v736
    %v741 = vmul.f32 %v733, %v737
    %v742 = vmul.f32 %v734, %v738
    %v743 = vmul.f32 %v739, %v741
    %v744 = vmul.f32 %v740, %v742
    %v747 = vrot.slane %v743, 4
    %v748 = vrot.slane %v744, 4
    %v751 = vmul.f32 %v743, %v747
    %v752 = vmul.f32 %v744, %v748
    %v755 = vrot.slane %v751, 2
    %v756 = vrot.slane %v752, 2
    %v759 = vmul.f32 %v751, %v755
    %v760 = vmul.f32 %v752, %v756
    %v763 = vrot.slane %v759, 1
    %v764 = vrot.slane %v760, 1
    %v767 = vmul.f32 %v759, %v763
    %v768 = vmul.f32 %v760, %v764
    %v769 = vsub.f32 %v675, %v667
    %v770 = vsub.f32 %v676, %v668
    %v771 = vsub.f32 %v677, %v669
    %v772 = vsub.f32 %v678, %v670
    %v773 = vsub.f32 %v679, %v671
    %v774 = vsub.f32 %v680, %v672
    %v775 = vsub.f32 %v681, %v673
    %v776 = vsub.f32 %v682, %v674
    %v777 = vmul.f32 %v769, %v773
    %v778 = vmul.f32 %v770, %v774
    %v779 = vmul.f32 %v771, %v775
    %v780 = vmul.f32 %v772, %v776
    %v781 = vmul.f32 %v777, %v779
    %v782 = vmul.f32 %v778, %v780
    %v785 = vrot.slane %v781, 4
    %v786 = vrot.slane %v782, 4
    %v789 = vmul.f32 %v781, %v785
    %v790 = vmul.f32 %v782, %v786
    %v793 = vrot.slane %v789, 2
    %v794 = vrot.slane %v790, 2
    %v797 = vmul.f32 %v789, %v793
    %v798 = vmul.f32 %v790, %v794
    %v801 = vrot.slane %v797, 1
    %v802 = vrot.slane %v798, 1
    %v805 = vmul.f32 %v797, %v801
    %v806 = vmul.f32 %v798, %v802
    %v807 = vrcp.pop %v805
    %v808 = vmul.f32 %v767, %v807
    %v809 = vrcp.pop %v806
    %v810 = vmul.f32 %v768, %v809
    %v813 = vcombine.low %v808, %v810
    %v815 = vunpack.c.l.s4 1966171168
    %v816 = vunpack.c.0.s8 %v815
    %v817 = vlaneseq
    %v818 = vshrl.u32 %v817, 7
    %v819 = vsub.s32 %v816, %v818
    %v820 = vrot.slane %v813, %v819
    %v822 = vunpack.c.l.s4 1966171168
    %v823 = vunpack.c.0.s8 %v822
    %v824 = vlaneseq
    %v825 = vshrl.u32 %v824, 7
    %v826 = vsub.s32 %v823, %v825
    %v827 = vrot.slane %v820, %v826
    %v829 = vlaneseq
    %vm830 = vcmp.ge.s32.totalorder %v829, 0
    %vm831 = vcmp.lt.s32.totalorder %v829, 256
    %vm832 = vmand %vm830, %vm831
    %833 = vst.msk [vmem:[#allocation2] sm:$0x3] %vm832, %v827
    // Predicated region
    $region10: #{tpu_custom_call.1} parent=1 // pred_check
      _
    $region11: #{tpu_custom_call.1} parent=1 // pred_check_branch
      %835 = sbr.rel (0) target = $region13
    $region12: #{tpu_custom_call.1} parent=1 // pred_region
      %s837 = ssub.s32 32, 32
      %838 = vsyncadd [#allocation3], %s837
      %s840 = sshll.u32 [#allocation2], 4
      %s841 = int_to_ptr.vmem [resolvable:$true] %s840
      %843 = dma.vmem_to_hbm [thread:$0]  %s841, 32, %s2, [#allocation3]
    $region13: #{tpu_custom_call.1} parent=1 // pred_fallthru
      _
    // Predicated region
    $region14: #{tpu_custom_call.1} parent=1 // pred_check
      _
    $region15: #{tpu_custom_call.1} parent=1 // pred_check_branch
      %845 = sbr.rel (0) target = $region17
    $region16: #{tpu_custom_call.1} parent=1 // pred_region
      %846 = dma.done [#allocation3], 32
    $region17: #{tpu_custom_call.1} parent=1 // pred_fallthru
      _
    %847 = vsyncpa [#allocation3], 1

</llo_original>
